<compile_context>
chip_gen: v7x
topology: tpu7x:2x2x1
jax: 0.10.0
libtpu: 0.0.40
codegen_flags: <defaults>
</compile_context>

<pallas_src>
import functools

import jax
import jax.numpy as jnp
from jax.experimental import pallas as pl
from jax.experimental.pallas import tpu as pltpu


def _round_up(x, m):
    return (x + m - 1) // m * m


def _leaky_layer_kernel(p_ref, w_ref, gamma_ref, beta_ref, o_ref, *,
                        eps, leak, b_tile, hw, hw_pad):
    # p_ref:     (ckk_pad, b_tile*hw_pad)  bf16  zero-padded patch slab
    # w_ref:     (c_out, ckk_pad)          bf16  flattened conv weight
    # gamma_ref: (c_out, 1)                f32   instance-norm scale
    # beta_ref:  (c_out, 1)                f32   instance-norm shift
    # o_ref:     (b_tile, c_out, hw_pad)   f32
    w = w_ref[...]
    p = p_ref[...]

    # One wide MXU matmul covering all b_tile samples of this grid step.
    y = jnp.dot(w, p, preferred_element_type=jnp.float32)  # (c_out, b_tile*hw_pad)

    gamma = gamma_ref[...]                                  # (c_out, 1)
    beta = beta_ref[...]
    inv_hw = 1.0 / float(hw)  # divide by the REAL spatial size (pad cols are 0)

    # Static unroll over the (small) per-step batch tile.
    for b in range(b_tile):
        yb = y[:, b * hw_pad:(b + 1) * hw_pad]              # (c_out, hw_pad)
        # Single-pass sum / sum-of-squares (f32 accumulators).
        s = jnp.sum(yb, axis=1, keepdims=True)
        sq = jnp.sum(yb * yb, axis=1, keepdims=True)
        mean = s * inv_hw
        var = sq * inv_hw - mean * mean                     # biased, matches InstanceNorm2d
        scale = gamma * jax.lax.rsqrt(var + eps)            # (c_out, 1)
        shift = beta - mean * scale
        z = yb * scale + shift                              # single FMA epilogue
        o_ref[b] = jnp.where(z >= 0, z, leak * z).astype(o_ref.dtype)


def _im2col(x, k, stride, pad):
    # x: (N, Cin, H, W)  ->  (Cin*K*K, N, Hout*Wout), row index = ci*K*K + i*K + j
    n, c, h, w = x.shape
    xp = jnp.pad(x, ((0, 0), (0, 0), (pad, pad), (pad, pad)))
    h_out = (h + 2 * pad - k) // stride + 1
    w_out = (w + 2 * pad - k) // stride + 1
    views = []
    for i in range(k):
        for j in range(k):
            views.append(
                xp[:, :, i:i + stride * h_out:stride, j:j + stride * w_out:stride])
    p = jnp.stack(views, axis=2)                 # (N, C, K*K, Hout, Wout)
    p = p.transpose(1, 2, 0, 3, 4)               # (C, K*K, N, Hout, Wout)
    p = p.reshape(c * k * k, n, h_out * w_out)
    return p, h_out, w_out


def leaky_layer(x, weight, gamma, beta, *, kernel_size, stride, leak=0.2, eps=1e-5):
    """x: (N, Cin, H, W) NCHW; weight: (Cout, Cin, K, K) (PyTorch conv layout)."""
    n, c_in, _, _ = x.shape
    c_out = weight.shape[0]
    k = kernel_size
    # Matches nn.Conv2d(padding=kernel_size // 2); exact "same" only for odd k.
    pad = k // 2

    patches, h_out, w_out = _im2col(x, k, stride, pad)       # (ckk, N, hw)
    hw = h_out * w_out
    ckk = c_in * k * k
    ckk_pad = _round_up(ckk, 8)        # sublane-aligned contraction dim
    hw_pad = _round_up(hw, 128)        # lane-aligned spatial dim

    # Batch tile: largest divisor of n that is <= 8 while keeping >= 2 grid
    # steps (keeps both v7x TensorCores busy; no-op on v5e/v6e).
    b_tile = 1
    for cand in range(min(8, n), 0, -1):
        if n % cand == 0 and (n // cand >= 2 or n == 1):
            b_tile = cand
            break
    grid = n // b_tile

    # Zero-pad contraction + spatial axes; zeros change neither the matmul
    # result nor the (sum, sumsq) statistics.
    patches = jnp.pad(patches, ((0, ckk_pad - ckk), (0, 0), (0, hw_pad - hw)))
    patches = patches.reshape(ckk_pad, n * hw_pad).astype(jnp.bfloat16)

    w_flat = weight.reshape(c_out, ckk)
    w_flat = jnp.pad(w_flat, ((0, 0), (0, ckk_pad - ckk))).astype(jnp.bfloat16)
    gamma2 = gamma.reshape(c_out, 1).astype(jnp.float32)
    beta2 = beta.reshape(c_out, 1).astype(jnp.float32)

    kernel = functools.partial(_leaky_layer_kernel, eps=eps, leak=leak,
                               b_tile=b_tile, hw=hw, hw_pad=hw_pad)

    cost = pl.CostEstimate(
        flops=2 * n * c_out * ckk * hw + 6 * n * c_out * hw,
        transcendentals=n * c_out,
        bytes_accessed=(patches.size * 2                     # bf16 patches
                        + grid * w_flat.size * 2             # bf16 weights (re-read per step)
                        + grid * 2 * c_out * 4               # gamma/beta
                        + n * c_out * hw_pad * 4),           # f32 output
    )

    out = pl.pallas_call(
        kernel,
        out_shape=jax.ShapeDtypeStruct((n, c_out, hw_pad), jnp.float32),
        grid_spec=pltpu.PrefetchScalarGridSpec(
            num_scalar_prefetch=0,
            grid=(grid,),
            in_specs=[
                pl.BlockSpec((ckk_pad, b_tile * hw_pad), lambda b: (0, b)),  # patches
                pl.BlockSpec((c_out, ckk_pad), lambda b: (0, 0)),            # weight
                pl.BlockSpec((c_out, 1), lambda b: (0, 0)),                  # gamma
                pl.BlockSpec((c_out, 1), lambda b: (0, 0)),                  # beta
            ],
            out_specs=pl.BlockSpec((b_tile, c_out, hw_pad), lambda b: (b, 0, 0)),
        ),
        compiler_params=pltpu.CompilerParams(
            dimension_semantics=("parallel",),
            vmem_limit_bytes=64 * 1024 * 1024,
        ),
        cost_estimate=cost,
    )(patches, w_flat, gamma2, beta2)

    out = out[:, :, :hw]                                     # drop lane padding
    return out.reshape(n, c_out, h_out, w_out)               # NCHW


def _reference(x, weight, gamma, beta, *, kernel_size, stride, leak=0.2, eps=1e-5):
    pad = kernel_size // 2
    y = jax.lax.conv_general_dilated(
        x.astype(jnp.float32),
        weight.astype(jnp.float32),
        window_strides=(stride, stride),
        padding=[(pad, pad), (pad, pad)],
        dimension_numbers=("NCHW", "OIHW", "NCHW"),
    )
    mean = jnp.mean(y, axis=(2, 3), keepdims=True)
    var = jnp.mean((y - mean) ** 2, axis=(2, 3), keepdims=True)
    y = (y - mean) * jax.lax.rsqrt(var + eps)
    y = y * gamma.reshape(1, -1, 1, 1) + beta.reshape(1, -1, 1, 1)
    return jnp.where(y >= 0, y, leak * y)


if __name__ == "__main__":
    # Small, deterministic example consistent with the module's __init__.
    N, C_IN, C_OUT, H, W = 2, 4, 8, 16, 16
    K, STRIDE, LEAK = 3, 1, 0.2

    key = jax.random.PRNGKey(0)
    kx, kw = jax.random.split(key)
    x = jax.random.normal(kx, (N, C_IN, H, W), dtype=jnp.float32)
    weight = jax.random.normal(kw, (C_OUT, C_IN, K, K), dtype=jnp.float32) * 0.1
    gamma = jnp.ones((C_OUT,), dtype=jnp.float32)   # InstanceNorm2d affine defaults
    beta = jnp.zeros((C_OUT,), dtype=jnp.float32)

    out = leaky_layer(x, weight, gamma, beta, kernel_size=K, stride=STRIDE, leak=LEAK)
    out = jax.block_until_ready(out)

    ref = _reference(x, weight, gamma, beta, kernel_size=K, stride=STRIDE, leak=LEAK)
    assert out.shape == ref.shape
    # Tolerance accounts for the bf16 matmul inputs (f32 accumulation).
    assert jnp.allclose(out, ref, atol=2e-2, rtol=2e-2), "mismatch vs reference"

    print("KERNEL_OK")
</pallas_src>

<mosaic_0001>
module attributes {stable_mosaic.version = 11 : i64} {
  func.func @_leaky_layer_kernel(%arg0: i32, %arg1: memref<40x256xbf16, #tpu.memory_space<vmem>>, %arg2: memref<8x40xbf16, #tpu.memory_space<vmem>>, %arg3: memref<8x1xf32, #tpu.memory_space<vmem>>, %arg4: memref<8x1xf32, #tpu.memory_space<vmem>>, %arg5: memref<1x8x256xf32, #tpu.memory_space<vmem>>) attributes {dimension_semantics = [#tpu.dimension_semantics<parallel>], iteration_bounds = array<i64: 2>, scalar_prefetch = 0 : i64, scratch_operands = 0 : i64, tpu.core_type = #tpu.core_type<tc>, window_params = [{transform_indices = @transform_0, window_bounds = array<i64: 40, 256>}, {pipeline_mode = #tpu.pipeline_mode<synchronous>, transform_indices = @transform_1, window_bounds = array<i64: 8, 40>}, {pipeline_mode = #tpu.pipeline_mode<synchronous>, transform_indices = @transform_2, window_bounds = array<i64: 8, 1>}, {pipeline_mode = #tpu.pipeline_mode<synchronous>, transform_indices = @transform_3, window_bounds = array<i64: 8, 1>}, {transform_indices = @transform_4, window_bounds = array<i64: 1, 8, 256>}]} {
    %c0 = arith.constant 0 : index
    %c0_0 = arith.constant 0 : index
    %0 = vector.load %arg2[%c0, %c0_0] : memref<8x40xbf16, #tpu.memory_space<vmem>>, vector<8x40xbf16>
    %c0_1 = arith.constant 0 : index
    %c0_2 = arith.constant 0 : index
    %1 = vector.load %arg1[%c0_1, %c0_2] : memref<40x256xbf16, #tpu.memory_space<vmem>>, vector<40x256xbf16>
    %cst = arith.constant dense<0.000000e+00> : vector<8x256xf32>
    %2 = tpu.matmul %0, %1, %cst {dimension_numbers = #tpu.dot_dimension_numbers<[1], [0], [0], [1], [0, 0, 1, 1], [], []>} : vector<8x40xbf16>, vector<40x256xbf16>, vector<8x256xf32> -> vector<8x256xf32>
    %c0_3 = arith.constant 0 : index
    %c0_4 = arith.constant 0 : index
    %3 = vector.load %arg3[%c0_3, %c0_4] : memref<8x1xf32, #tpu.memory_space<vmem>>, vector<8x1xf32>
    %c0_5 = arith.constant 0 : index
    %c0_6 = arith.constant 0 : index
    %4 = vector.load %arg4[%c0_5, %c0_6] : memref<8x1xf32, #tpu.memory_space<vmem>>, vector<8x1xf32>
    %cst_7 = arith.constant dense<0.000000e+00> : vector<8xf32>
    %5 = vector.multi_reduction <add>, %2, %cst_7 [1] : vector<8x256xf32> to vector<8xf32>
    %6 = vector.shape_cast %5 : vector<8xf32> to vector<8x1xf32>
    %7 = arith.mulf %2, %2 : vector<8x256xf32>
    %cst_8 = arith.constant dense<0.000000e+00> : vector<8xf32>
    %8 = vector.multi_reduction <add>, %7, %cst_8 [1] : vector<8x256xf32> to vector<8xf32>
    %9 = vector.shape_cast %8 : vector<8xf32> to vector<8x1xf32>
    %cst_9 = arith.constant 3.906250e-03 : f32
    %10 = vector.broadcast %cst_9 : f32 to vector<8x1xf32>
    %11 = arith.mulf %6, %10 : vector<8x1xf32>
    %cst_10 = arith.constant 3.906250e-03 : f32
    %12 = vector.broadcast %cst_10 : f32 to vector<8x1xf32>
    %13 = arith.mulf %9, %12 : vector<8x1xf32>
    %14 = arith.mulf %11, %11 : vector<8x1xf32>
    %15 = arith.subf %13, %14 : vector<8x1xf32>
    %cst_11 = arith.constant 9.99999974E-6 : f32
    %16 = vector.broadcast %cst_11 : f32 to vector<8x1xf32>
    %17 = arith.addf %15, %16 : vector<8x1xf32>
    %18 = math.rsqrt %17 : vector<8x1xf32>
    %19 = arith.mulf %3, %18 : vector<8x1xf32>
    %20 = arith.mulf %11, %19 : vector<8x1xf32>
    %21 = arith.subf %4, %20 : vector<8x1xf32>
    %22 = vector.broadcast %19 : vector<8x1xf32> to vector<8x256xf32>
    %23 = arith.mulf %2, %22 : vector<8x256xf32>
    %24 = vector.broadcast %21 : vector<8x1xf32> to vector<8x256xf32>
    %25 = arith.addf %23, %24 : vector<8x256xf32>
    %cst_12 = arith.constant 0.000000e+00 : f32
    %26 = vector.broadcast %cst_12 : f32 to vector<8x256xf32>
    %27 = arith.cmpf oge, %25, %26 : vector<8x256xf32>
    %cst_13 = arith.constant 2.000000e-01 : f32
    %28 = vector.broadcast %cst_13 : f32 to vector<8x256xf32>
    %29 = arith.mulf %28, %25 : vector<8x256xf32>
    %30 = arith.select %27, %25, %29 : vector<8x256xi1>, vector<8x256xf32>
    %c0_14 = arith.constant 0 : index
    %c0_15 = arith.constant 0 : index
    %c0_16 = arith.constant 0 : index
    %31 = vector.load %arg5[%c0_14, %c0_15, %c0_16] : memref<1x8x256xf32, #tpu.memory_space<vmem>>, vector<1x8x256xf32>
    %32 = vector.shape_cast %31 : vector<1x8x256xf32> to vector<8x256xf32>
    %33 = vector.shape_cast %30 : vector<8x256xf32> to vector<1x8x256xf32>
    tpu.vector_store %arg5[%c0_14, %c0_15, %c0_16], %33 {strides = array<i32>} : memref<1x8x256xf32, #tpu.memory_space<vmem>>, vector<1x8x256xf32>,
    return
  }
  func.func @transform_0(%arg0: i32) -> (i32, i32) {
    %c0_i32 = arith.constant 0 : i32
    %c0_i32_0 = arith.constant 0 : i32
    return %c0_i32, %arg0 : i32, i32
  }
  func.func @transform_1(%arg0: i32) -> (i32, i32) {
    %c0_i32 = arith.constant 0 : i32
    %c0_i32_0 = arith.constant 0 : i32
    %c0_i32_1 = arith.constant 0 : i32
    return %c0_i32, %c0_i32_0 : i32, i32
  }
  func.func @transform_2(%arg0: i32) -> (i32, i32) {
    %c0_i32 = arith.constant 0 : i32
    %c0_i32_0 = arith.constant 0 : i32
    %c0_i32_1 = arith.constant 0 : i32
    return %c0_i32, %c0_i32_0 : i32, i32
  }
  func.func @transform_3(%arg0: i32) -> (i32, i32) {
    %c0_i32 = arith.constant 0 : i32
    %c0_i32_0 = arith.constant 0 : i32
    %c0_i32_1 = arith.constant 0 : i32
    return %c0_i32, %c0_i32_0 : i32, i32
  }
  func.func @transform_4(%arg0: i32) -> (i32, i32, i32) {
    %c0_i32 = arith.constant 0 : i32
    %c0_i32_0 = arith.constant 0 : i32
    %c0_i32_1 = arith.constant 0 : i32
    return %arg0, %c0_i32, %c0_i32_0 : i32, i32, i32
  }
}

</mosaic_0001>

<llo_original>
// kernel: tpu_custom_call.1
$region0: #{tpu_custom_call.1}
  #allocation0 [shape = 'u32[]', space=smem, size = 0x4, offset = 0x4, fixed_abs, tag = 'smem constant byte address 0x4 - core index']
  #allocation1 [shape = 'u32[144,128]{1,0:T(1,128)}', space=vmem, size = 0x12000, scoped, tag = 'internal scratch']
  %s0 = inlined_call_operand.hbm [shape: bf16[40,512], index: 0, kind: input, shape index: {}]
  %s1 = inlined_call_operand.hbm [shape: bf16[8,40], index: 1, kind: input, shape index: {}]
  %s2 = inlined_call_operand.hbm [shape: f32[8,1], index: 2, kind: input, shape index: {}]
  %s3 = inlined_call_operand.hbm [shape: f32[8,1], index: 3, kind: input, shape index: {}]
  %s4 = inlined_call_operand.hbm [shape: f32[2,8,256], index: 4, kind: output, shape index: {}]
  %s5 = sld [smem:[#allocation0]]
  $region65: #{tpu_custom_call.1} parent=0
    _
  %s7 = ssub.s32 1, %s5
  %s8 = scalar_select 0, %s7, %s5
  $region1: #{tpu_custom_call.1} parent=0
    #allocation2 [shape = 'u8[40960]{0}', space=vmem, size = 0xa000, scoped, tag = 'input window, operand 0']
    #allocation3 [shape = 's32[2]{0}', space=sflag, size = 0x8, scoped, tag = 'scoped memory for tpu_custom_call.1']
    #allocation4 [shape = 's32[2]{0}', space=sflag, size = 0x8, scoped, tag = 'scoped memory for tpu_custom_call.1']
    #allocation5 [shape = 'u8[2048]{0}', space=vmem, size = 0x800, scoped, tag = 'input window, operand 1, single buffered']
    #allocation6 [shape = 's32[1]{0}', space=sflag, size = 0x4, scoped, tag = 'scoped memory for tpu_custom_call.1']
    #allocation7 [shape = 'u8[4096]{0}', space=vmem, size = 0x1000, scoped, tag = 'input window, operand 2, single buffered']
    #allocation8 [shape = 'u8[4096]{0}', space=vmem, size = 0x1000, scoped, tag = 'input window, operand 3, single buffered']
    #allocation9 [shape = 's32[1]{0}', space=sflag, size = 0x4, scoped, tag = 'scoped memory for tpu_custom_call.1']
    #allocation10 [shape = 'u8[16384]{0}', space=vmem, size = 0x4000, scoped, tag = 'output window, operand 0']
    %9 = vsyncpa [#allocation3], 0
    %s10 = scalar_lea.sflag [#allocation3], 1
    %11 = vsyncpa %s10, 0
    %12 = vsyncpa [#allocation6], 0
    %13 = vsyncpa [#allocation9], 0
    %14 = vsyncpa [#allocation4], 0
    %s15 = scalar_lea.sflag [#allocation4], 1
    %16 = vsyncpa %s15, 0
    loop: start=0, step=1, limit=4
    $region2: #{tpu_custom_call.1} parent=1 // loop_pre_header
      _
    $region3: #{tpu_custom_call.1} parent=1 // loop_header
      %s18 = sphi 0, %s22
      %p19 = scmp.ge.s32.totalorder %s18, 4
      %s28 = sphi 0, %s30
      %s31 = sphi 0, %s28
      %s32 = sphi 0, %s31
      %s48 = sphi 0, %s32
      %s52 = sphi 0, %s52
      %s54 = sphi 0, %s52
      %s55 = sphi 0, %s54
      %s69 = sphi 0, %s55
      %s73 = sphi 0, %s73
      %s75 = sphi 0, %s73
      %s76 = sphi 0, %s75
      %s90 = sphi 0, %s76
      %s94 = sphi 0, %s94
      %s96 = sphi 0, %s94
      %s97 = sphi 0, %s96
      %s111 = sphi 0, %s97
      %s117 = sphi 0, %s119
      %s120 = sphi 0, %s117
      %s121 = sphi 0, %s120
      %s137 = sphi 0, %s121
    $region4: #{tpu_custom_call.1} parent=1 // loop_header_branch
      %21 = sbr.rel (%p19) target = $region8
    $region5: #{tpu_custom_call.1} parent=1 // loop_body
      %s23 = ssub.s32 %s18, 1
      %s24 = ssub.s32 %s18, 2
      %s25 = sadd.s32 %s18, 1
      %s26 = ssub.s32 %s18, %s25
      %p27 = scmp.eq.s32.totalorder %s26, 0
      %s29 = sadd.s32 %s28, 1
      %s30 = scalar_select %p27, %s28, %s29
      %p33 = pneg %p27
      %p34 = scmp.eq.s32.totalorder %s18, 1
      %p35 = por %p33, %p34
      %p36 = scmp.ne.s32.totalorder %s28, %s31
      %p37 = scmp.eq.s32.totalorder %s18, 0
      %p38 = por %p36, %p37
      %p39 = scmp.ne.s32.totalorder %s28, %s31
      %p40 = scmp.eq.s32.totalorder %s23, 1
      %p41 = por %p39, %p40
      %p42 = scmp.ne.s32.totalorder %s31, %s32
      %p43 = scmp.eq.s32.totalorder %s23, 0
      %p44 = por %p42, %p43
      %p45 = scmp.ne.s32.totalorder %s31, %s32
      %p46 = scmp.eq.s32.totalorder %s24, 1
      %p47 = por %p45, %p46
      %p49 = scmp.ne.s32.totalorder %s32, %s48
      %p50 = scmp.eq.s32.totalorder %s24, 0
      %p51 = por %p49, %p50
      %s53 = sadd.s32 %s52, 1
      %p56 = scmp.eq.s32.totalorder %s18, 1
      %p57 = scmp.ne.s32.totalorder %s52, %s54
      %p58 = scmp.eq.s32.totalorder %s18, 0
      %p59 = por %p57, %p58
      %p60 = scmp.ne.s32.totalorder %s52, %s54
      %p61 = scmp.eq.s32.totalorder %s23, 1
      %p62 = por %p60, %p61
      %p63 = scmp.ne.s32.totalorder %s54, %s55
      %p64 = scmp.eq.s32.totalorder %s23, 0
      %p65 = por %p63, %p64
      %p66 = scmp.ne.s32.totalorder %s54, %s55
      %p67 = scmp.eq.s32.totalorder %s24, 1
      %p68 = por %p66, %p67
      %p70 = scmp.ne.s32.totalorder %s55, %s69
      %p71 = scmp.eq.s32.totalorder %s24, 0
      %p72 = por %p70, %p71
      %s74 = sadd.s32 %s73, 1
      %p77 = scmp.eq.s32.totalorder %s18, 1
      %p78 = scmp.ne.s32.totalorder %s73, %s75
      %p79 = scmp.eq.s32.totalorder %s18, 0
      %p80 = por %p78, %p79
      %p81 = scmp.ne.s32.totalorder %s73, %s75
      %p82 = scmp.eq.s32.totalorder %s23, 1
      %p83 = por %p81, %p82
      %p84 = scmp.ne.s32.totalorder %s75, %s76
      %p85 = scmp.eq.s32.totalorder %s23, 0
      %p86 = por %p84, %p85
      %p87 = scmp.ne.s32.totalorder %s75, %s76
      %p88 = scmp.eq.s32.totalorder %s24, 1
      %p89 = por %p87, %p88
      %p91 = scmp.ne.s32.totalorder %s76, %s90
      %p92 = scmp.eq.s32.totalorder %s24, 0
      %p93 = por %p91, %p92
      %s95 = sadd.s32 %s94, 1
      %p98 = scmp.eq.s32.totalorder %s18, 1
      %p99 = scmp.ne.s32.totalorder %s94, %s96
      %p100 = scmp.eq.s32.totalorder %s18, 0
      %p101 = por %p99, %p100
      %p102 = scmp.ne.s32.totalorder %s94, %s96
      %p103 = scmp.eq.s32.totalorder %s23, 1
      %p104 = por %p102, %p103
      %p105 = scmp.ne.s32.totalorder %s96, %s97
      %p106 = scmp.eq.s32.totalorder %s23, 0
      %p107 = por %p105, %p106
      %p108 = scmp.ne.s32.totalorder %s96, %s97
      %p109 = scmp.eq.s32.totalorder %s24, 1
      %p110 = por %p108, %p109
      %p112 = scmp.ne.s32.totalorder %s97, %s111
      %p113 = scmp.eq.s32.totalorder %s24, 0
      %p114 = por %p112, %p113
      %s115 = ssub.s32 %s18, %s25
      %p116 = scmp.eq.s32.totalorder %s115, 0
      %s118 = sadd.s32 %s117, 1
      %s119 = scalar_select %p116, %s117, %s118
      %p122 = pneg %p116
      %p123 = scmp.eq.s32.totalorder %s18, 1
      %p124 = por %p122, %p123
      %p125 = scmp.ne.s32.totalorder %s117, %s120
      %p126 = scmp.eq.s32.totalorder %s18, 0
      %p127 = por %p125, %p126
      %p128 = scmp.ne.s32.totalorder %s117, %s120
      %p129 = scmp.eq.s32.totalorder %s23, 1
      %p130 = por %p128, %p129
      %p131 = scmp.ne.s32.totalorder %s120, %s121
      %p132 = scmp.eq.s32.totalorder %s23, 0
      %p133 = por %p131, %p132
      %p134 = scmp.ne.s32.totalorder %s120, %s121
      %p135 = scmp.eq.s32.totalorder %s24, 1
      %p136 = por %p134, %p135
      %p138 = scmp.ne.s32.totalorder %s121, %s137
      %p139 = scmp.eq.s32.totalorder %s24, 0
      %p140 = por %p138, %p139
      %p141 = scmp.le.s32.totalorder 1, %s18
      %p142 = scmp.lt.s32.totalorder %s18, 3
      %p143 = pnand %p141, %p142
      %p144 = pneg %p143
      // Predicated region
      $region9: #{tpu_custom_call.1} parent=5 // pred_check
        _
      $region10: #{tpu_custom_call.1} parent=5 // pred_check_branch
        %146 = sbr.rel (%p143) target = $region12
      $region11: #{tpu_custom_call.1} parent=5 // pred_region
        %s147 = ssub.s32 %s18, 1
        // Predicated region
        $region13: #{tpu_custom_call.1} parent=11 // pred_check
          %p148 = pneg %p65
        $region14: #{tpu_custom_call.1} parent=11 // pred_check_branch
          %150 = sbr.rel (%p148) target = $region16
        $region15: #{tpu_custom_call.1} parent=11 // pred_region
          %s152 = ssub.s32 64, 64
          %153 = vsyncadd [#allocation6], %s152
          %s155 = sshll.u32 [#allocation5], 4
          %s156 = int_to_ptr.vmem [resolvable:$true] %s155
          %158 = dma.hbm_to_vmem [thread:$0]  %s1, 64, %s156, [#allocation6]
        $region16: #{tpu_custom_call.1} parent=11 // pred_fallthru
          _
        // Predicated region
        $region17: #{tpu_custom_call.1} parent=11 // pred_check
          %p159 = pneg %p86
        $region18: #{tpu_custom_call.1} parent=11 // pred_check_branch
          %161 = sbr.rel (%p159) target = $region20
        $region19: #{tpu_custom_call.1} parent=11 // pred_region
          %s163 = ssub.s32 128, 128
          %164 = vsyncadd [#allocation6], %s163
          %s166 = sshll.u32 [#allocation7], 4
          %s167 = int_to_ptr.vmem [resolvable:$true] %s166
          %169 = dma.hbm_to_vmem [thread:$0]  %s2, 128, %s167, [#allocation6]
        $region20: #{tpu_custom_call.1} parent=11 // pred_fallthru
          _
        // Predicated region
        $region21: #{tpu_custom_call.1} parent=11 // pred_check
          %p170 = pneg %p107
        $region22: #{tpu_custom_call.1} parent=11 // pred_check_branch
          %172 = sbr.rel (%p170) target = $region24
        $region23: #{tpu_custom_call.1} parent=11 // pred_region
          %s174 = ssub.s32 128, 128
          %175 = vsyncadd [#allocation9], %s174
          %s177 = sshll.u32 [#allocation8], 4
          %s178 = int_to_ptr.vmem [resolvable:$true] %s177
          %180 = dma.hbm_to_vmem [thread:$0]  %s3, 128, %s178, [#allocation9]
        $region24: #{tpu_custom_call.1} parent=11 // pred_fallthru
          _
      $region12: #{tpu_custom_call.1} parent=5 // pred_fallthru
        _
      %p181 = scmp.lt.s32.totalorder %s18, 2
      // Predicated region
      $region25: #{tpu_custom_call.1} parent=5 // pred_check
        %p182 = pneg %p181
      $region26: #{tpu_custom_call.1} parent=5 // pred_check_branch
        %184 = sbr.rel (%p182) target = $region28
      $region27: #{tpu_custom_call.1} parent=5 // pred_region
        // Predicated region
        $region29: #{tpu_custom_call.1} parent=27 // pred_check
          %p185 = pneg %p38
        $region30: #{tpu_custom_call.1} parent=27 // pred_check_branch
          %187 = sbr.rel (%p185) target = $region32
        $region31: #{tpu_custom_call.1} parent=27 // pred_region
          %s188 = sand.u32 %s28, 1
          %s189 = scalar_lea.sflag [#allocation3], %s188
          %s190 = sand.u32 %s28, 1
          %s191 = smul.addr %s190, 40
          %s192 = scalar_lea.vmem [#allocation2], %s191
          %s193 = smul.u32 2, %s18
          %s195 = ssub.s32 640, 640
          %196 = vsyncadd %s189, %s195
          %s197 = smul.addr %s193, 64
          %s198 = scalar_lea.hbm %s0, %s197
          %s199 = sshll.u32 %s192, 4
          %s200 = int_to_ptr.vmem [resolvable:$true] %s199
          %205 = dma.hbm_to_vmem [thread:$0]  %s198, 640, %s200, %s189, 256, 128, 8
        $region32: #{tpu_custom_call.1} parent=27 // pred_fallthru
          _
      $region28: #{tpu_custom_call.1} parent=5 // pred_fallthru
        _
      %p206 = scmp.le.s32.totalorder 1, %s18
      %p207 = scmp.lt.s32.totalorder %s18, 3
      %p208 = pnand %p206, %p207
      %p209 = pneg %p208
      // Predicated region
      $region33: #{tpu_custom_call.1} parent=5 // pred_check
        _
      $region34: #{tpu_custom_call.1} parent=5 // pred_check_branch
        %211 = sbr.rel (%p208) target = $region36
      $region35: #{tpu_custom_call.1} parent=5 // pred_region
        %s212 = ssub.s32 %s18, 1
        %s213 = sand.u32 %s31, 1
        %s214 = scalar_lea.sflag [#allocation3], %s213
        %s215 = sand.u32 %s31, 1
        %s216 = smul.addr %s215, 40
        %s217 = scalar_lea.vmem [#allocation2], %s216
        // Predicated region
        $region37: #{tpu_custom_call.1} parent=35 // pred_check
          %p218 = pneg %p44
        $region38: #{tpu_custom_call.1} parent=35 // pred_check_branch
          %220 = sbr.rel (%p218) target = $region40
        $region39: #{tpu_custom_call.1} parent=35 // pred_region
          %221 = dma.done %s214, 640
        $region40: #{tpu_custom_call.1} parent=35 // pred_fallthru
          _
        // Predicated region
        $region41: #{tpu_custom_call.1} parent=35 // pred_check
          %p222 = pneg %p65
        $region42: #{tpu_custom_call.1} parent=35 // pred_check_branch
          %224 = sbr.rel (%p222) target = $region44
        $region43: #{tpu_custom_call.1} parent=35 // pred_region
          %225 = dma.done [#allocation6], 64
        $region44: #{tpu_custom_call.1} parent=35 // pred_fallthru
          _
        // Predicated region
        $region45: #{tpu_custom_call.1} parent=35 // pred_check
          %p226 = pneg %p86
        $region46: #{tpu_custom_call.1} parent=35 // pred_check_branch
          %228 = sbr.rel (%p226) target = $region48
        $region47: #{tpu_custom_call.1} parent=35 // pred_region
          %229 = dma.done [#allocation6], 128
        $region48: #{tpu_custom_call.1} parent=35 // pred_fallthru
          _
        // Predicated region
        $region49: #{tpu_custom_call.1} parent=35 // pred_check
          %p230 = pneg %p107
        $region50: #{tpu_custom_call.1} parent=35 // pred_check_branch
          %232 = sbr.rel (%p230) target = $region52
        $region51: #{tpu_custom_call.1} parent=35 // pred_region
          %233 = dma.done [#allocation9], 128
        $region52: #{tpu_custom_call.1} parent=35 // pred_fallthru
          _
        %s234 = sand.u32 %s31, 1
        %s235 = scalar_lea.sflag [#allocation3], %s234
        %s236 = sand.u32 %s31, 1
        %s237 = smul.addr %s236, 40
        %s238 = scalar_lea.vmem [#allocation2], %s237
        %p239 = pneg %p44
        %p240 = pneg %p41
        %p241 = pneg %p65
        %p242 = pneg %p62
        %p243 = pneg %p86
        %p244 = pneg %p83
        %p245 = pneg %p107
        %p246 = pneg %p104
        %p247 = pneg %p133
        %p248 = pneg %p130
        %s249 = sand.u32 %s120, 1
        %s250 = scalar_lea.sflag [#allocation4], %s249
        %s251 = sand.u32 %s120, 1
        %s252 = smul.addr %s251, 16
        %s253 = scalar_lea.vmem [#allocation10], %s252
        %s254 = smul.u32 2, %s23
        %v256 = vld [vmem:[#allocation5] sm:$0xf]
        %v257 = vld [vmem:[%s217] sm:$0xff]
        %v258 = vld [vmem:[%s217 + $0x8] sm:$0xff]
        %v259 = vld [vmem:[%s217 + $0x10] sm:$0xff]
        %v260 = vld [vmem:[%s217 + $0x18] sm:$0xff]
        %v261 = vld [vmem:[%s217 + $0x20] sm:$0xff]
        %v267 = vunpack.c.l.b16 %v257
        %v268 = vunpack.c.h.b16 %v257
        %v269 = vunpack.c.l.b16 %v258
        %v270 = vunpack.c.h.b16 %v258
        %v271 = vunpack.c.l.b16 %v259
        %v272 = vunpack.c.h.b16 %v259
        %v273 = vunpack.c.l.b16 %v260
        %v274 = vunpack.c.h.b16 %v260
        %v275 = vunpack.c.l.b16 %v261
        %v276 = vunpack.c.h.b16 %v261
        %v277 = vpack.c.b16 %v269, %v267
        %v278 = vpack.c.b16 %v270, %v268
        %v279 = vpack.c.b16 %v273, %v271
        %v280 = vpack.c.b16 %v274, %v272
        %v281 = vpack.c.b16 %v275, %v275
        %v282 = vpack.c.b16 %v276, %v276
        %vm287 = vcmask 326656
        %v289 = vsel %vm287, %v256, 0
        %vm291 = vcmask 1043456
        %v293 = vsel %vm291, %v281, 0
        %v296 = vsel %vm291, %v282, 0
        %298 = vmatprep.subr.bf16.mxu0 %v278
        %299 = vmatpush1.bf16.msra.mxu0 %v277
        %300 = vmatprep.subr.bf16.mxu0 %v280
        %301 = vmatpush1.bf16.msra.mxu0 %v279
        %302 = vmatprep.subr.bf16.mxu0 %v296
        %303 = vmatpush1.bf16.msra.mxu0 %v293
        %304 = vmatprep.subr.bf16.mxu0 0
        %305 = vmatpush1.bf16.msra.mxu0 0
        %306 = vmatprep.subr.bf16.mxu0 0
        %307 = vmatpush1.bf16.msra.mxu0 0
        %308 = vmatprep.subr.bf16.mxu0 0
        %309 = vmatpush1.bf16.msra.mxu0 0
        %310 = vmatprep.subr.bf16.mxu0 0
        %311 = vmatpush1.bf16.msra.mxu0 0
        %312 = vmatprep.subr.bf16.mxu0 0
        %313 = vmatpush1.bf16.msra.mxu0 0
        %314 = vmatprep.subr.bf16.mxu0 0
        %315 = vmatpush1.bf16.msra.mxu0 0
        %316 = vmatprep.subr.bf16.mxu0 0
        %317 = vmatpush1.bf16.msra.mxu0 0
        %318 = vmatprep.subr.bf16.mxu0 0
        %319 = vmatpush1.bf16.msra.mxu0 0
        %320 = vmatprep.subr.bf16.mxu0 0
        %321 = vmatpush1.bf16.msra.mxu0 0
        %322 = vmatprep.subr.bf16.mxu0 0
        %323 = vmatpush1.bf16.msra.mxu0 0
        %324 = vmatprep.subr.bf16.mxu0 0
        %325 = vmatpush1.bf16.msra.mxu0 0
        %326 = vmatprep.subr.bf16.mxu0 0
        %327 = vmatpush1.bf16.msra.mxu0 0
        %328 = vmatprep.subr.bf16.mxu0 0
        %329 = vmatpush1.bf16.msra.mxu0 0
        %330 = vmatprep.mubr.bf16.mxu0 0
        %331 = vmatmul.mubr.bf16.gmra.mrb[0].mxu0 %v289
        %v332 = vpop.f32.mrb[0].mxu0
        %v333 = vadd.f32 0.0, %v332
        %v334 = vpop.f32.mrb[0].mxu0
        %v335 = vadd.f32 0.0, %v334
        %v336 = vpop.f32.mrb[0].mxu0
        %v337 = vpop.f32.mrb[0].mxu0
        %338 = vdwg.mxu0
        %v339 = vld [vmem:[#allocation7] sm:$0xff]
        %v340 = vld [vmem:[#allocation8] sm:$0xff]
        %v341 = vadd.f32 %v333, %v335
        %342 = vadd.xlane.f32.xlu0 %v341
        %v343 = vpop.xlane.xlu0 %342
        %v344 = vmul.f32 %v333, %v333
        %v345 = vmul.f32 %v335, %v335
        %v346 = vadd.f32 %v344, %v345
        %347 = vadd.xlane.f32.xlu0 %v346
        %v348 = vpop.xlane.xlu0 %347
        %v349 = vmul.f32 %v343, 0.00390625
        %v350 = vmul.f32 %v348, 0.00390625
        %v351 = vmul.f32 %v349, %v349
        %v352 = vsub.f32 %v350, %v351
        %v353 = vadd.f32 %v352, 1e-05
        %v354 = vrsqrt.pop %v353
        %v355 = vmul.f32 %v339, %v354
        %v356 = vmul.f32 %v349, %v355
        %v357 = vsub.f32 %v340, %v356
        %359 = vset.pattern.permute.xlu0 0
        %360 = vperm.xlu0 %359, %v355
        %v361 = vpop.permute.xlu0 %360
        %v363 = vmul.f32 %v333, %v361
        %v364 = vmul.f32 %v335, %v361
        %366 = vset.pattern.permute.xlu0 0
        %367 = vperm.xlu0 %366, %v357
        %v368 = vpop.permute.xlu0 %367
        %v370 = vadd.f32 %v363, %v368
        %v371 = vadd.f32 %v364, %v368
        %vm372 = vcmp.ge.f32.partialorder %v370, 0.0
        %vm373 = vcmp.ge.f32.partialorder %v371, 0.0
        %v374 = vmul.f32 %v370, 0.2
        %v375 = vmul.f32 %v371, 0.2
        %v376 = vsel %vm372, %v370, %v374
        %v377 = vsel %vm373, %v371, %v375
        %378 = vst [vmem:[%s253] sm:$0xff] %v376
        %379 = vst [vmem:[%s253 + $0x8] sm:$0xff] %v377
        %s380 = sand.u32 %s120, 1
        %s381 = scalar_lea.sflag [#allocation4], %s380
        %s382 = sand.u32 %s120, 1
        %s383 = smul.addr %s382, 16
        %s384 = scalar_lea.vmem [#allocation10], %s383
        // Predicated region
        $region53: #{tpu_custom_call.1} parent=35 // pred_check
          %p385 = pneg %p130
        $region54: #{tpu_custom_call.1} parent=35 // pred_check_branch
          %387 = sbr.rel (%p385) target = $region56
        $region55: #{tpu_custom_call.1} parent=35 // pred_region
          %s389 = ssub.s32 256, 256
          %390 = vsyncadd %s381, %s389
          %s391 = smul.addr %s23, 2
          %s392 = smul.addr %s391, 128
          %s393 = scalar_lea.hbm %s4, %s392
          %s395 = sshll.u32 %s384, 4
          %s396 = int_to_ptr.vmem [resolvable:$true] %s395
          %398 = dma.vmem_to_hbm [thread:$0]  %s396, 256, %s393, %s381
        $region56: #{tpu_custom_call.1} parent=35 // pred_fallthru
          _
      $region36: #{tpu_custom_call.1} parent=5 // pred_fallthru
        _
      %p399 = scmp.le.s32.totalorder 2, %s18
      // Predicated region
      $region57: #{tpu_custom_call.1} parent=5 // pred_check
        %p400 = pneg %p399
      $region58: #{tpu_custom_call.1} parent=5 // pred_check_branch
        %402 = sbr.rel (%p400) target = $region60
      $region59: #{tpu_custom_call.1} parent=5 // pred_region
        %s403 = ssub.s32 %s18, 2
        // Predicated region
        $region61: #{tpu_custom_call.1} parent=59 // pred_check
          %p404 = pneg %p136
        $region62: #{tpu_custom_call.1} parent=59 // pred_check_branch
          %406 = sbr.rel (%p404) target = $region64
        $region63: #{tpu_custom_call.1} parent=59 // pred_region
          %s407 = sand.u32 %s121, 1
          %s408 = scalar_lea.sflag [#allocation4], %s407
          %s409 = sand.u32 %s121, 1
          %s410 = smul.addr %s409, 16
          %s411 = scalar_lea.vmem [#allocation10], %s410
          %412 = dma.done %s408, 256
        $region64: #{tpu_custom_call.1} parent=59 // pred_fallthru
          _
      $region60: #{tpu_custom_call.1} parent=5 // pred_fallthru
        _
    $region6: #{tpu_custom_call.1} parent=1 // loop_footer
      %s22 = sadd.s32 1, %s18
    $region7: #{tpu_custom_call.1} parent=1 // loop_footer_branch
      %17 = sbr.rel target = $region3
    $region8: #{tpu_custom_call.1} parent=1 // loop_exit
      _
    %413 = vsyncpa [#allocation3], 1
    %s414 = scalar_lea.sflag [#allocation3], 1
    %415 = vsyncpa %s414, 1
    %416 = vsyncpa [#allocation6], 1
    %417 = vsyncpa [#allocation9], 1
    %418 = vsyncpa [#allocation4], 1
    %s419 = scalar_lea.sflag [#allocation4], 1
    %420 = vsyncpa %s419, 1

</llo_original>
